<compile_context>
chip_gen: v7x
topology: tpu7x:2x2x1
jax: 0.10.0
libtpu: 0.0.40
codegen_flags: <defaults>
</compile_context>

<pallas_src>
import jax
import jax.numpy as jnp
from jax import lax
from jax.experimental import pallas as pl
from jax.experimental.pallas import tpu as pltpu

LN_EPS = 1e-5


def taxo_embedding_kernel(tok_ids_smem,            # (N,)    int32, SMEM (scalar prefetch)
                          typ_ids_ref,             # (TM,1)  int32, VMEM
                          tok_tab_hbm,             # (V,H)   float, HBM (pl.ANY)
                          typ_tab_ref,             # (T,H)   float, VMEM
                          pos_ref,                 # (R,H)   float, VMEM (resident)
                          gamma_ref, beta_ref,     # (1,H)   f32,   VMEM
                          out_ref,                 # (TM,H)  out,   VMEM
                          gather_buf,              # (2*TM,H) scratch (double-buffered gather)
                          sems):                   # (2,)    DMA semaphores, one per slot
    TM, H = out_ref.shape
    T = typ_tab_ref.shape[0]
    R = pos_ref.shape[0]

    n_inner = pl.num_programs(1)
    j = pl.program_id(1)                              # inner ("arbitrary") index
    t = pl.program_id(0) * n_inner + j                # global tile index
    slot = j & 1                                      # which half of gather_buf holds tile t

    def issue_gather(tile_idx, slot_idx):
        """Issue TM row DMAs (token table rows -> gather scratch), all on one semaphore."""
        base = tile_idx * TM
        off = pl.multiple_of(slot_idx * TM, TM)

        @pl.loop(0, TM)
        def _(r):
            tok_id = tok_ids_smem[base + r]
            pltpu.make_async_copy(
                tok_tab_hbm.at[pl.ds(tok_id, 1), :],
                gather_buf.at[pl.ds(off + r, 1), :],
                sems.at[slot_idx]).start()

    # Prime: first tile of this inner sequence gathers into slot 0.
    @pl.when(j == 0)
    def _():
        issue_gather(t, slot)

    # Prefetch next tile's rows into the other slot (issued BEFORE the wait so the
    # SMEM id reads + descriptor issue overlap with this tile's VPU work).
    @pl.when(j + 1 < n_inner)
    def _():
        issue_gather(t + 1, 1 - slot)

    # ---- VPU work while the gather DMAs are in flight: type + position embedding ----
    typ_ids = typ_ids_ref[...]                        # (TM,1) int32
    s_blocks = R // TM
    pos_start = pl.multiple_of((t % s_blocks) * TM, TM)
    tp = pos_ref[pl.ds(pos_start, TM), :]             # (TM,H) position rows (VMEM resident)
    for tt in range(T):                               # T is tiny & static -> VPU select-add
        row = typ_tab_ref[tt, :][None, :]             # (1,H)
        tp = tp + jnp.where(typ_ids == tt, row, 0.0)  # broadcast -> (TM,H)
    # (If T ever grows beyond ~16, switch this to a one-hot (TM,T)x(T,H) MXU matmul.)

    # ---- Single wait for this tile's TM row copies (TM*H bytes on one semaphore) ----
    off = pl.multiple_of(slot * TM, TM)
    pltpu.make_async_copy(tok_tab_hbm.at[pl.ds(0, TM), :],
                          gather_buf.at[pl.ds(off, TM), :],
                          sems.at[slot]).wait()

    emb = (gather_buf[pl.ds(off, TM), :] + tp).astype(jnp.float32)

    # ---- LayerNorm over H (single-pass stats, f32 accumulation), then affine ----
    inv_h = 1.0 / H
    mean = jnp.sum(emb, axis=-1, keepdims=True) * inv_h
    ex2 = jnp.sum(emb * emb, axis=-1, keepdims=True) * inv_h
    var = ex2 - mean * mean
    normed = (emb - mean) * lax.rsqrt(var + LN_EPS)
    out_ref[...] = (normed * gamma_ref[...] + beta_ref[...]).astype(out_ref.dtype)


def _pick_row_tile(B, S, H, V, itemsize, out_itemsize, cap=512, vmem_budget=24 << 20):
    """Largest row tile TM (multiple of 8) with TM | S or TM = k*S (k | B), TM <= V,
    and per-tile VMEM footprint within budget (so it fits v5e scoped / v7x 64 MiB)."""
    cands = set()
    for tm in range(8, min(S, cap) + 1, 8):
        if S % tm == 0:
            cands.add(tm)
    for k in range(1, B + 1):
        tm = k * S
        if tm > cap:
            break
        if B % k == 0 and tm % 8 == 0:
            cands.add(tm)
    best = 0
    for tm in sorted(cands):
        if tm > V:
            continue
        rpos = max(S, tm)
        foot = (2 * tm * H * out_itemsize      # pipelined output blocks
                + 2 * tm * H * itemsize        # double-buffered gather scratch
                + 2 * rpos * H * itemsize      # resident position rows (+ spare buffer)
                + 4 * tm * 4                   # type-id blocks
                + 4 * H * 8)                   # LN params, type table (small)
        if foot <= vmem_budget:
            best = tm
    if best == 0:
        raise ValueError("no valid row tile: need a multiple-of-8 divisor of S (or a "
                         "multiple of S dividing B*S) that is <= vocab size and fits VMEM")
    return best


def taxo_embedding(token_ids, type_ids, tok_tab, typ_tab, pos_tab, gamma, beta,
                   *, row_tile=None, out_dtype=None):
    """token_ids, type_ids: (B, S) int. Returns (B, S, H) in out_dtype (default: table dtype).
    Pass out_dtype=jnp.bfloat16 to halve HBM writeback on bandwidth-bound shapes."""
    B, S = token_ids.shape
    V, H = tok_tab.shape
    T = typ_tab.shape[0]
    P = pos_tab.shape[0]
    assert P >= S, "position table shorter than sequence"

    tab_dtype = tok_tab.dtype
    if out_dtype is None:
        out_dtype = tab_dtype
    itemsize = jnp.dtype(tab_dtype).itemsize
    out_itemsize = jnp.dtype(out_dtype).itemsize

    N = B * S
    if row_tile is not None:
        TM = int(row_tile)
        if (TM % 8 != 0 or N % TM != 0 or not (S % TM == 0 or TM % S == 0) or TM > V):
            raise ValueError("row_tile must be a multiple of 8 dividing B*S, either "
                             "dividing S or a multiple of S, and <= vocab size")
    else:
        TM = _pick_row_tile(B, S, H, V, itemsize, out_itemsize)

    # Position rows kept VMEM-resident; pre-tile if a row tile spans multiple sequences.
    if TM <= S:
        pos_resident = pos_tab[:S]
    else:
        pos_resident = jnp.tile(pos_tab[:S], (TM // S, 1))
    R = pos_resident.shape[0]

    n_tiles = N // TM
    # Outer axis is "parallel" (megacore on v7x); the double-buffer pipeline lives on the
    # inner "arbitrary" axis so priming at inner==0 is correct on every core.
    G_par = 2 if (n_tiles % 2 == 0 and n_tiles >= 4) else 1
    G_seq = n_tiles // G_par

    tok_ids_flat = token_ids.astype(jnp.int32).reshape(N)
    typ_ids_col = type_ids.astype(jnp.int32).reshape(N, 1)
    gamma2 = gamma.reshape(1, H).astype(jnp.float32)
    beta2 = beta.reshape(1, H).astype(jnp.float32)

    vmem_est = (2 * TM * H * out_itemsize + 2 * TM * H * itemsize
                + 2 * R * H * itemsize + 4 * TM * 4
                + T * H * itemsize + 4 * H * 4)
    vmem_limit = int(min(64 << 20, max(16 << 20, vmem_est + (8 << 20))))

    # Memory/latency-bound kernel: ~0 matmul FLOPs; traffic = gathered rows + output.
    cost = pl.CostEstimate(
        flops=N * H * (2 * T + 8),
        transcendentals=N,
        bytes_accessed=int(N * H * itemsize           # gathered token rows
                           + N * H * out_itemsize     # output writeback
                           + R * H * itemsize         # resident position rows (once)
                           + T * H * itemsize + 2 * H * 4 + N * 4 * 2),
    )

    out = pl.pallas_call(
        taxo_embedding_kernel,
        out_shape=jax.ShapeDtypeStruct((N, H), out_dtype),
        grid_spec=pltpu.PrefetchScalarGridSpec(
            num_scalar_prefetch=1,                    # token ids -> SMEM for DMA addressing
            grid=(G_par, G_seq),
            in_specs=[
                pl.BlockSpec((TM, 1), lambda i, j, tok: (i * G_seq + j, 0)),   # type ids
                pl.BlockSpec(memory_space=pl.ANY),                             # token table (HBM)
                pl.BlockSpec((T, H), lambda i, j, tok: (0, 0)),                # type table
                pl.BlockSpec((R, H), lambda i, j, tok: (0, 0)),                # pos rows (resident)
                pl.BlockSpec((1, H), lambda i, j, tok: (0, 0)),                # LN gamma
                pl.BlockSpec((1, H), lambda i, j, tok: (0, 0)),                # LN beta
            ],
            out_specs=pl.BlockSpec((TM, H), lambda i, j, tok: (i * G_seq + j, 0)),
            scratch_shapes=[
                pltpu.VMEM((2 * TM, H), tab_dtype),    # double-buffered gathered rows
                pltpu.SemaphoreType.DMA((2,)),         # one semaphore per buffer slot
            ],
        ),
        compiler_params=pltpu.CompilerParams(
            dimension_semantics=("parallel", "arbitrary"),
            vmem_limit_bytes=vmem_limit),
        cost_estimate=cost,
    )(tok_ids_flat, typ_ids_col, tok_tab, typ_tab, pos_resident, gamma2, beta2)

    return out.reshape(B, S, H)


def reference(token_ids, type_ids, tok_tab, typ_tab, pos_tab, gamma, beta):
    B, S = token_ids.shape
    emb = (tok_tab[token_ids]
           + typ_tab[type_ids]
           + pos_tab[jnp.arange(S)][None, :, :])
    mean = jnp.mean(emb, axis=-1, keepdims=True)
    var = jnp.mean(jnp.square(emb - mean), axis=-1, keepdims=True)
    return (emb - mean) * lax.rsqrt(var + LN_EPS) * gamma + beta


if __name__ == "__main__":
    # Small, module-consistent shapes (lane-dense hidden).
    B, S, H = 2, 64, 128        # batch, sequence, hidden_size
    V = 512                     # token vocab size (token_embedding)
    T = 4                       # type_embedding_max
    P = 64                      # pos_embedding_max (>= S)

    key = jax.random.PRNGKey(0)
    k_tok, k_typ, k_pos, k_ids, k_tids = jax.random.split(key, 5)

    tok_tab = jax.random.normal(k_tok, (V, H), dtype=jnp.float32)
    typ_tab = jax.random.normal(k_typ, (T, H), dtype=jnp.float32)
    pos_tab = jax.random.normal(k_pos, (P, H), dtype=jnp.float32)
    gamma = jnp.ones((H,), dtype=jnp.float32)
    beta = jnp.zeros((H,), dtype=jnp.float32)

    token_ids = jax.random.randint(k_ids, (B, S), 0, V, dtype=jnp.int32)
    type_ids = jax.random.randint(k_tids, (B, S), 0, T, dtype=jnp.int32)

    ref = reference(token_ids, type_ids, tok_tab, typ_tab, pos_tab, gamma, beta)

    # 1) Explicit small tile -> multi-step grid: exercises prime + prefetch + single-wait
    #    pipeline and the TM < S position-slicing path.
    out1 = taxo_embedding(token_ids, type_ids, tok_tab, typ_tab, pos_tab, gamma, beta,
                          row_tile=32)
    out1 = jax.block_until_ready(out1)
    assert out1.shape == (B, S, H)
    assert jnp.allclose(out1, ref, atol=1e-4, rtol=1e-4), "mismatch vs reference (tiled)"

    # 2) Auto tile -> larger TM = k*S: exercises the pre-tiled resident-position path.
    out2 = taxo_embedding(token_ids, type_ids, tok_tab, typ_tab, pos_tab, gamma, beta)
    out2 = jax.block_until_ready(out2)
    assert out2.shape == (B, S, H)
    assert jnp.allclose(out2, ref, atol=1e-4, rtol=1e-4), "mismatch vs reference (auto)"

    print("KERNEL_OK")
</pallas_src>

<mosaic_0001>
module attributes {stable_mosaic.version = 11 : i64} {
  func.func @taxo_embedding_kernel(%arg0: i32, %arg1: i32, %arg2: memref<128xi32, #tpu.memory_space<smem>>, %arg3: memref<32x1xi32, #tpu.memory_space<vmem>>, %arg4: memref<512x128xf32, #tpu.memory_space<any>>, %arg5: memref<4x128xf32, #tpu.memory_space<vmem>>, %arg6: memref<64x128xf32, #tpu.memory_space<vmem>>, %arg7: memref<1x128xf32, #tpu.memory_space<vmem>>, %arg8: memref<1x128xf32, #tpu.memory_space<vmem>>, %arg9: memref<32x128xf32, #tpu.memory_space<vmem>>, %arg10: memref<64x128xf32, #tpu.memory_space<vmem>>, %arg11: memref<2x!tpu.dma_semaphore, #tpu.memory_space<semaphore_mem>>) attributes {dimension_semantics = [#tpu.dimension_semantics<parallel>, #tpu.dimension_semantics<arbitrary>], iteration_bounds = array<i64: 2, 2>, scalar_prefetch = 1 : i64, scratch_operands = 2 : i64, tpu.core_type = #tpu.core_type<tc>, window_params = [{transform_indices = @transform_0, window_bounds = array<i64: 32, 1>}, {}, {pipeline_mode = #tpu.pipeline_mode<synchronous>, transform_indices = @transform_2, window_bounds = array<i64: 4, 128>}, {pipeline_mode = #tpu.pipeline_mode<synchronous>, transform_indices = @transform_3, window_bounds = array<i64: 64, 128>}, {pipeline_mode = #tpu.pipeline_mode<synchronous>, transform_indices = @transform_4, window_bounds = array<i64: 1, 128>}, {pipeline_mode = #tpu.pipeline_mode<synchronous>, transform_indices = @transform_5, window_bounds = array<i64: 1, 128>}, {transform_indices = @transform_6, window_bounds = array<i64: 32, 128>}]} {
    %c2_i32 = arith.constant 2 : i32
    %0 = arith.muli %arg0, %c2_i32 : i32
    %1 = arith.addi %0, %arg1 : i32
    %c1_i32 = arith.constant 1 : i32
    %2 = arith.andi %arg1, %c1_i32 : i32
    %c0_i32 = arith.constant 0 : i32
    %3 = arith.cmpi eq, %arg1, %c0_i32 : i32
    %4 = arith.extui %3 : i1 to i32
    %c0_i32_0 = arith.constant 0 : i32
    %5 = arith.cmpi ne, %4, %c0_i32_0 : i32
    scf.if %5 {
      %c32_i32_39 = arith.constant 32 : i32
      %107 = arith.muli %1, %c32_i32_39 : i32
      %c32_i32_40 = arith.constant 32 : i32
      %108 = arith.muli %2, %c32_i32_40 : i32
      %109 = tpu.assume_multiple %108, 32 : i32
      %c0_i32_41 = arith.constant 0 : i32
      %c32_i32_42 = arith.constant 32 : i32
      %110 = arith.addi %c0_i32_41, %c32_i32_42 : i32
      %c1_i32_43 = arith.constant 1 : i32
      scf.for %arg12 = %c0_i32_41 to %110 step %c1_i32_43  : i32 {
        %c1_i32_45 = arith.constant 1 : i32
        %111 = arith.muli %arg12, %c1_i32_45 : i32
        %c0_i32_46 = arith.constant 0 : i32
        %112 = arith.addi %c0_i32_46, %111 : i32
        %113 = arith.addi %107, %112 : i32
        %114 = arith.index_cast %113 : i32 to index
        %115 = memref.load %arg2[%114] : memref<128xi32, #tpu.memory_space<smem>>
        %116 = arith.addi %109, %112 : i32
        %c0_i32_47 = arith.constant 0 : i32
        %117 = tpu.memref_slice %arg4[%115, %c0_i32_47] : memref<512x128xf32, #tpu.memory_space<any>> -> memref<1x128xf32, #tpu.memory_space<any>>
        %c0_i32_48 = arith.constant 0 : i32
        %118 = tpu.memref_slice %arg10[%116, %c0_i32_48] : memref<64x128xf32, #tpu.memory_space<vmem>> -> memref<1x128xf32, #tpu.memory_space<vmem>>
        %119 = tpu.memref_slice %arg11[%2] : memref<2x!tpu.dma_semaphore, #tpu.memory_space<semaphore_mem>> -> memref<1x!tpu.dma_semaphore, #tpu.memory_space<semaphore_mem>>
        %120 = tpu.memref_squeeze %119 : memref<1x!tpu.dma_semaphore, #tpu.memory_space<semaphore_mem>> -> memref<!tpu.dma_semaphore, #tpu.memory_space<semaphore_mem>>
        tpu.enqueue_dma source(%117 : memref<1x128xf32, #tpu.memory_space<any>>) target(%118 : memref<1x128xf32, #tpu.memory_space<vmem>>) target_semaphore(%120 : memref<!tpu.dma_semaphore, #tpu.memory_space<semaphore_mem>>)
      }
      %c32_i32_44 = arith.constant 32 : i32
    } else {
    }
    %c1_i32_1 = arith.constant 1 : i32
    %6 = arith.addi %arg1, %c1_i32_1 : i32
    %c2_i32_2 = arith.constant 2 : i32
    %7 = arith.cmpi slt, %6, %c2_i32_2 : i32
    %8 = arith.extui %7 : i1 to i32
    %c0_i32_3 = arith.constant 0 : i32
    %9 = arith.cmpi ne, %8, %c0_i32_3 : i32
    scf.if %9 {
      %c1_i32_39 = arith.constant 1 : i32
      %107 = arith.addi %1, %c1_i32_39 : i32
      %c1_i32_40 = arith.constant 1 : i32
      %108 = arith.subi %c1_i32_40, %2 : i32
      %c32_i32_41 = arith.constant 32 : i32
      %109 = arith.muli %107, %c32_i32_41 : i32
      %c32_i32_42 = arith.constant 32 : i32
      %110 = arith.muli %108, %c32_i32_42 : i32
      %111 = tpu.assume_multiple %110, 32 : i32
      %c0_i32_43 = arith.constant 0 : i32
      %c32_i32_44 = arith.constant 32 : i32
      %112 = arith.addi %c0_i32_43, %c32_i32_44 : i32
      %c1_i32_45 = arith.constant 1 : i32
      scf.for %arg12 = %c0_i32_43 to %112 step %c1_i32_45  : i32 {
        %c1_i32_47 = arith.constant 1 : i32
        %113 = arith.muli %arg12, %c1_i32_47 : i32
        %c0_i32_48 = arith.constant 0 : i32
        %114 = arith.addi %c0_i32_48, %113 : i32
        %115 = arith.addi %109, %114 : i32
        %116 = arith.index_cast %115 : i32 to index
        %117 = memref.load %arg2[%116] : memref<128xi32, #tpu.memory_space<smem>>
        %118 = arith.addi %111, %114 : i32
        %c0_i32_49 = arith.constant 0 : i32
        %119 = tpu.memref_slice %arg4[%117, %c0_i32_49] : memref<512x128xf32, #tpu.memory_space<any>> -> memref<1x128xf32, #tpu.memory_space<any>>
        %c0_i32_50 = arith.constant 0 : i32
        %120 = tpu.memref_slice %arg10[%118, %c0_i32_50] : memref<64x128xf32, #tpu.memory_space<vmem>> -> memref<1x128xf32, #tpu.memory_space<vmem>>
        %121 = tpu.memref_slice %arg11[%108] : memref<2x!tpu.dma_semaphore, #tpu.memory_space<semaphore_mem>> -> memref<1x!tpu.dma_semaphore, #tpu.memory_space<semaphore_mem>>
        %122 = tpu.memref_squeeze %121 : memref<1x!tpu.dma_semaphore, #tpu.memory_space<semaphore_mem>> -> memref<!tpu.dma_semaphore, #tpu.memory_space<semaphore_mem>>
        tpu.enqueue_dma source(%119 : memref<1x128xf32, #tpu.memory_space<any>>) target(%120 : memref<1x128xf32, #tpu.memory_space<vmem>>) target_semaphore(%122 : memref<!tpu.dma_semaphore, #tpu.memory_space<semaphore_mem>>)
      }
      %c32_i32_46 = arith.constant 32 : i32
    } else {
    }
    %c0 = arith.constant 0 : index
    %c0_4 = arith.constant 0 : index
    %10 = vector.load %arg3[%c0, %c0_4] : memref<32x1xi32, #tpu.memory_space<vmem>>, vector<32x1xi32>
    %c2_i32_5 = arith.constant 2 : i32
    %c0_i32_6 = arith.constant 0 : i32
    %11 = arith.cmpi eq, %c2_i32_5, %c0_i32_6 : i32
    %c1_i32_7 = arith.constant 1 : i32
    %12 = arith.select %11, %c1_i32_7, %c2_i32_5 : i32
    %13 = arith.remsi %1, %12 : i32
    %c0_i32_8 = arith.constant 0 : i32
    %14 = arith.cmpi ne, %13, %c0_i32_8 : i32
    %c0_i32_9 = arith.constant 0 : i32
    %15 = arith.cmpi slt, %13, %c0_i32_9 : i32
    %c0_i32_10 = arith.constant 0 : i32
    %16 = arith.cmpi slt, %12, %c0_i32_10 : i32
    %17 = arith.xori %15, %16 : i1
    %18 = arith.andi %17, %14 : i1
    %19 = arith.addi %13, %12 : i32
    %20 = arith.select %18, %19, %13 : i32
    %c32_i32 = arith.constant 32 : i32
    %21 = arith.muli %20, %c32_i32 : i32
    %22 = tpu.assume_multiple %21, 32 : i32
    %23 = arith.index_cast %22 : i32 to index
    %c0_11 = arith.constant 0 : index
    %24 = vector.load %arg6[%23, %c0_11] : memref<64x128xf32, #tpu.memory_space<vmem>>, vector<32x128xf32>
    %c0_12 = arith.constant 0 : index
    %c0_13 = arith.constant 0 : index
    %25 = vector.load %arg5[%c0_12, %c0_13] : memref<4x128xf32, #tpu.memory_space<vmem>>, vector<1x128xf32>
    %26 = vector.shape_cast %25 : vector<1x128xf32> to vector<128xf32>
    %27 = vector.shape_cast %26 : vector<128xf32> to vector<1x128xf32>
    %c0_i32_14 = arith.constant 0 : i32
    %28 = vector.broadcast %c0_i32_14 : i32 to vector<32x1xi32>
    %29 = arith.cmpi eq, %10, %28 : vector<32x1xi32>
    %cst = arith.constant 0.000000e+00 : f32
    %30 = vector.shape_cast %29 : vector<32x1xi1> to vector<32x1xi1>
    %31 = vector.broadcast %30 : vector<32x1xi1> to vector<32x128xi1>
    %32 = vector.shape_cast %27 : vector<1x128xf32> to vector<1x128xf32>
    %33 = vector.broadcast %32 : vector<1x128xf32> to vector<32x128xf32>
    %34 = vector.broadcast %cst : f32 to vector<32x128xf32>
    %35 = arith.select %31, %33, %34 : vector<32x128xi1>, vector<32x128xf32>
    %36 = arith.addf %24, %35 : vector<32x128xf32>
    %c1 = arith.constant 1 : index
    %c0_15 = arith.constant 0 : index
    %37 = vector.load %arg5[%c1, %c0_15] : memref<4x128xf32, #tpu.memory_space<vmem>>, vector<1x128xf32>
    %38 = vector.shape_cast %37 : vector<1x128xf32> to vector<128xf32>
    %39 = vector.shape_cast %38 : vector<128xf32> to vector<1x128xf32>
    %c1_i32_16 = arith.constant 1 : i32
    %40 = vector.broadcast %c1_i32_16 : i32 to vector<32x1xi32>
    %41 = arith.cmpi eq, %10, %40 : vector<32x1xi32>
    %cst_17 = arith.constant 0.000000e+00 : f32
    %42 = vector.shape_cast %41 : vector<32x1xi1> to vector<32x1xi1>
    %43 = vector.broadcast %42 : vector<32x1xi1> to vector<32x128xi1>
    %44 = vector.shape_cast %39 : vector<1x128xf32> to vector<1x128xf32>
    %45 = vector.broadcast %44 : vector<1x128xf32> to vector<32x128xf32>
    %46 = vector.broadcast %cst_17 : f32 to vector<32x128xf32>
    %47 = arith.select %43, %45, %46 : vector<32x128xi1>, vector<32x128xf32>
    %48 = arith.addf %36, %47 : vector<32x128xf32>
    %c2 = arith.constant 2 : index
    %c0_18 = arith.constant 0 : index
    %49 = vector.load %arg5[%c2, %c0_18] : memref<4x128xf32, #tpu.memory_space<vmem>>, vector<1x128xf32>
    %50 = vector.shape_cast %49 : vector<1x128xf32> to vector<128xf32>
    %51 = vector.shape_cast %50 : vector<128xf32> to vector<1x128xf32>
    %c2_i32_19 = arith.constant 2 : i32
    %52 = vector.broadcast %c2_i32_19 : i32 to vector<32x1xi32>
    %53 = arith.cmpi eq, %10, %52 : vector<32x1xi32>
    %cst_20 = arith.constant 0.000000e+00 : f32
    %54 = vector.shape_cast %53 : vector<32x1xi1> to vector<32x1xi1>
    %55 = vector.broadcast %54 : vector<32x1xi1> to vector<32x128xi1>
    %56 = vector.shape_cast %51 : vector<1x128xf32> to vector<1x128xf32>
    %57 = vector.broadcast %56 : vector<1x128xf32> to vector<32x128xf32>
    %58 = vector.broadcast %cst_20 : f32 to vector<32x128xf32>
    %59 = arith.select %55, %57, %58 : vector<32x128xi1>, vector<32x128xf32>
    %60 = arith.addf %48, %59 : vector<32x128xf32>
    %c3 = arith.constant 3 : index
    %c0_21 = arith.constant 0 : index
    %61 = vector.load %arg5[%c3, %c0_21] : memref<4x128xf32, #tpu.memory_space<vmem>>, vector<1x128xf32>
    %62 = vector.shape_cast %61 : vector<1x128xf32> to vector<128xf32>
    %63 = vector.shape_cast %62 : vector<128xf32> to vector<1x128xf32>
    %c3_i32 = arith.constant 3 : i32
    %64 = vector.broadcast %c3_i32 : i32 to vector<32x1xi32>
    %65 = arith.cmpi eq, %10, %64 : vector<32x1xi32>
    %cst_22 = arith.constant 0.000000e+00 : f32
    %66 = vector.shape_cast %65 : vector<32x1xi1> to vector<32x1xi1>
    %67 = vector.broadcast %66 : vector<32x1xi1> to vector<32x128xi1>
    %68 = vector.shape_cast %63 : vector<1x128xf32> to vector<1x128xf32>
    %69 = vector.broadcast %68 : vector<1x128xf32> to vector<32x128xf32>
    %70 = vector.broadcast %cst_22 : f32 to vector<32x128xf32>
    %71 = arith.select %67, %69, %70 : vector<32x128xi1>, vector<32x128xf32>
    %72 = arith.addf %60, %71 : vector<32x128xf32>
    %c32_i32_23 = arith.constant 32 : i32
    %73 = arith.muli %2, %c32_i32_23 : i32
    %74 = tpu.assume_multiple %73, 32 : i32
    %c0_i32_24 = arith.constant 0 : i32
    %c0_i32_25 = arith.constant 0 : i32
    %75 = tpu.memref_slice %arg4[%c0_i32_24, %c0_i32_25] : memref<512x128xf32, #tpu.memory_space<any>> -> memref<32x128xf32, #tpu.memory_space<any>>
    %c0_i32_26 = arith.constant 0 : i32
    %76 = tpu.memref_slice %arg10[%74, %c0_i32_26] : memref<64x128xf32, #tpu.memory_space<vmem>> -> memref<32x128xf32, #tpu.memory_space<vmem>>
    %77 = tpu.memref_slice %arg11[%2] : memref<2x!tpu.dma_semaphore, #tpu.memory_space<semaphore_mem>> -> memref<1x!tpu.dma_semaphore, #tpu.memory_space<semaphore_mem>>
    %78 = tpu.memref_squeeze %77 : memref<1x!tpu.dma_semaphore, #tpu.memory_space<semaphore_mem>> -> memref<!tpu.dma_semaphore, #tpu.memory_space<semaphore_mem>>
    tpu.wait_dma2 semaphore(%78 : memref<!tpu.dma_semaphore, #tpu.memory_space<semaphore_mem>>) src(%75 : memref<32x128xf32, #tpu.memory_space<any>>) dst(%76 : memref<32x128xf32, #tpu.memory_space<vmem>>)
    %79 = arith.index_cast %74 : i32 to index
    %c0_27 = arith.constant 0 : index
    %80 = vector.load %arg10[%79, %c0_27] : memref<64x128xf32, #tpu.memory_space<vmem>>, vector<32x128xf32>
    %81 = arith.addf %80, %72 : vector<32x128xf32>
    %cst_28 = arith.constant dense<0.000000e+00> : vector<32xf32>
    %82 = vector.multi_reduction <add>, %81, %cst_28 [1] : vector<32x128xf32> to vector<32xf32>
    %83 = vector.shape_cast %82 : vector<32xf32> to vector<32x1xf32>
    %cst_29 = arith.constant 7.812500e-03 : f32
    %84 = vector.broadcast %cst_29 : f32 to vector<32x1xf32>
    %85 = arith.mulf %83, %84 : vector<32x1xf32>
    %86 = arith.mulf %81, %81 : vector<32x128xf32>
    %cst_30 = arith.constant dense<0.000000e+00> : vector<32xf32>
    %87 = vector.multi_reduction <add>, %86, %cst_30 [1] : vector<32x128xf32> to vector<32xf32>
    %88 = vector.shape_cast %87 : vector<32xf32> to vector<32x1xf32>
    %cst_31 = arith.constant 7.812500e-03 : f32
    %89 = vector.broadcast %cst_31 : f32 to vector<32x1xf32>
    %90 = arith.mulf %88, %89 : vector<32x1xf32>
    %91 = arith.mulf %85, %85 : vector<32x1xf32>
    %92 = arith.subf %90, %91 : vector<32x1xf32>
    %93 = vector.broadcast %85 : vector<32x1xf32> to vector<32x128xf32>
    %94 = arith.subf %81, %93 : vector<32x128xf32>
    %cst_32 = arith.constant 9.99999974E-6 : f32
    %95 = vector.broadcast %cst_32 : f32 to vector<32x1xf32>
    %96 = arith.addf %92, %95 : vector<32x1xf32>
    %97 = math.rsqrt %96 : vector<32x1xf32>
    %98 = vector.broadcast %97 : vector<32x1xf32> to vector<32x128xf32>
    %99 = arith.mulf %94, %98 : vector<32x128xf32>
    %c0_33 = arith.constant 0 : index
    %c0_34 = arith.constant 0 : index
    %100 = vector.load %arg7[%c0_33, %c0_34] : memref<1x128xf32, #tpu.memory_space<vmem>>, vector<1x128xf32>
    %101 = vector.broadcast %100 : vector<1x128xf32> to vector<32x128xf32>
    %102 = arith.mulf %99, %101 : vector<32x128xf32>
    %c0_35 = arith.constant 0 : index
    %c0_36 = arith.constant 0 : index
    %103 = vector.load %arg8[%c0_35, %c0_36] : memref<1x128xf32, #tpu.memory_space<vmem>>, vector<1x128xf32>
    %104 = vector.broadcast %103 : vector<1x128xf32> to vector<32x128xf32>
    %105 = arith.addf %102, %104 : vector<32x128xf32>
    %c0_37 = arith.constant 0 : index
    %c0_38 = arith.constant 0 : index
    %106 = vector.load %arg9[%c0_37, %c0_38] : memref<32x128xf32, #tpu.memory_space<vmem>>, vector<32x128xf32>
    tpu.vector_store %arg9[%c0_37, %c0_38], %105 {strides = array<i32>} : memref<32x128xf32, #tpu.memory_space<vmem>>, vector<32x128xf32>,
    return
  }
  func.func @transform_0(%arg0: i32, %arg1: i32, %arg2: memref<128xi32, #tpu.memory_space<smem>>) -> (i32, i32) {
    %c2_i32 = arith.constant 2 : i32
    %0 = arith.muli %arg0, %c2_i32 : i32
    %1 = arith.addi %0, %arg1 : i32
    %c0_i32 = arith.constant 0 : i32
    %c0_i32_0 = arith.constant 0 : i32
    return %1, %c0_i32 : i32, i32
  }
  func.func @transform_2(%arg0: i32, %arg1: i32, %arg2: memref<128xi32, #tpu.memory_space<smem>>) -> (i32, i32) {
    %c0_i32 = arith.constant 0 : i32
    %c0_i32_0 = arith.constant 0 : i32
    %c0_i32_1 = arith.constant 0 : i32
    return %c0_i32, %c0_i32_0 : i32, i32
  }
  func.func @transform_3(%arg0: i32, %arg1: i32, %arg2: memref<128xi32, #tpu.memory_space<smem>>) -> (i32, i32) {
    %c0_i32 = arith.constant 0 : i32
    %c0_i32_0 = arith.constant 0 : i32
    %c0_i32_1 = arith.constant 0 : i32
    return %c0_i32, %c0_i32_0 : i32, i32
  }
  func.func @transform_4(%arg0: i32, %arg1: i32, %arg2: memref<128xi32, #tpu.memory_space<smem>>) -> (i32, i32) {
    %c0_i32 = arith.constant 0 : i32
    %c0_i32_0 = arith.constant 0 : i32
    %c0_i32_1 = arith.constant 0 : i32
    return %c0_i32, %c0_i32_0 : i32, i32
  }
  func.func @transform_5(%arg0: i32, %arg1: i32, %arg2: memref<128xi32, #tpu.memory_space<smem>>) -> (i32, i32) {
    %c0_i32 = arith.constant 0 : i32
    %c0_i32_0 = arith.constant 0 : i32
    %c0_i32_1 = arith.constant 0 : i32
    return %c0_i32, %c0_i32_0 : i32, i32
  }
  func.func @transform_6(%arg0: i32, %arg1: i32, %arg2: memref<128xi32, #tpu.memory_space<smem>>) -> (i32, i32) {
    %c2_i32 = arith.constant 2 : i32
    %0 = arith.muli %arg0, %c2_i32 : i32
    %1 = arith.addi %0, %arg1 : i32
    %c0_i32 = arith.constant 0 : i32
    %c0_i32_0 = arith.constant 0 : i32
    return %1, %c0_i32 : i32, i32
  }
}

</mosaic_0001>

<llo_original>
// kernel: tpu_custom_call.1
$region0: #{tpu_custom_call.1}
  #allocation0 [shape = 'u32[]', space=smem, size = 0x4, offset = 0x4, fixed_abs, tag = 'smem constant byte address 0x4 - core index']
  #allocation1 [shape = 'u32[144,128]{1,0:T(1,128)}', space=vmem, size = 0x12000, scoped, tag = 'internal scratch']
  #allocation2 [shape = 'f32[64,128]{1,0:T(8,128)}', space=vmem, size = 0x8000, scoped, tag = 'scratch operand']
  #allocation3 [shape = 's32[2]{0}', space=sflag, size = 0x8, scoped, tag = 'scratch operand']
  #allocation4 [shape = 's32[1]{0}', space=sflag, size = 0x4, scoped, tag = 'scoped memory for tpu_custom_call.1']
  #allocation5 [shape = 'u8[512]{0}', space=smem, size = 0x200, scoped, tag = 'prefetched SMEM operand 0']
  #allocation8 [shape = 's32[]', space=sflag, size = 0x4, offset = 0, fixed_abs, tag = 'sflag constant byte address 0x0 - dummy sync flag']
  #allocation9 [shape = 's32[]', space=sflag, size = 0x4, offset = 0, fixed_abs, tag = 'sflag constant byte address 0x0 - dummy sync flag']
  #allocation10 [shape = 'u32[]', space=smem, size = 0x4, offset = 0x44, fixed_abs, tag = 'smem constant byte address 0x44 - assertion arg 0']
  #allocation11 [shape = 'u32[]', space=smem, size = 0x4, offset = 0x48, fixed_abs, tag = 'smem constant byte address 0x48 - assertion arg 1']
  #allocation12 [shape = 's32[]', space=sflag, size = 0x4, offset = 0, fixed_abs, tag = 'sflag constant byte address 0x0 - dummy sync flag']
  #allocation13 [shape = 's32[]', space=sflag, size = 0x4, offset = 0, fixed_abs, tag = 'sflag constant byte address 0x0 - dummy sync flag']
  %s0 = inlined_call_operand.vmem [shape: s32[128], index: 0, kind: input, shape index: {}]
  %s1 = inlined_call_operand.vmem [shape: s32[128,1], index: 1, kind: input, shape index: {}]
  %s2 = inlined_call_operand.hbm [shape: f32[512,128], index: 2, kind: input, shape index: {}]
  %s3 = inlined_call_operand.vmem [shape: f32[4,128], index: 3, kind: input, shape index: {}]
  %s4 = inlined_call_operand.vmem [shape: f32[64,128], index: 4, kind: input, shape index: {}]
  %s5 = inlined_call_operand.vmem [shape: f32[1,128], index: 5, kind: input, shape index: {}]
  %s6 = inlined_call_operand.vmem [shape: f32[1,128], index: 6, kind: input, shape index: {}]
  %s7 = inlined_call_operand.hbm [shape: f32[128,128], index: 7, kind: output, shape index: {}]
  %s8 = sld [smem:[#allocation0]]
  $region83: #{tpu_custom_call.1} parent=0
    _
  %s10 = ssub.s32 1, %s8
  %s11 = scalar_select 0, %s10, %s8
  %s12 = sshll.u32 %s0, 4
  %s13 = int_to_ptr.vmem [resolvable:$true] %s12
  %15 = dma.vmem_to_smem %s13, 16, [#allocation5], [#allocation4]
  %16 = dma.done [#allocation4], 16
  %17 = sfence
  $region1: #{tpu_custom_call.1} parent=0
    #allocation6 [shape = 'u8[32768]{0}', space=vmem, size = 0x8000, scoped, tag = 'output window, operand 0']
    #allocation7 [shape = 's32[2]{0}', space=sflag, size = 0x8, scoped, tag = 'scoped memory for tpu_custom_call.1']
    %18 = vsyncpa [#allocation7], 0
    %s19 = scalar_lea.sflag [#allocation7], 1
    %20 = vsyncpa %s19, 0
    loop: start=0, step=1, limit=6
    $region2: #{tpu_custom_call.1} parent=1 // loop_pre_header
      _
    $region3: #{tpu_custom_call.1} parent=1 // loop_header
      %s22 = sphi 0, %s26
      %p23 = scmp.ge.s32.totalorder %s22, 6
      %s29 = sphi 0, %s41
      %s30 = sphi 0, %s37
      %s31 = sphi 0, %s29
      %s32 = sphi 0, %s30
      %s33 = sphi 0, %s31
      %s34 = sphi 0, %s32
      %s48 = sphi 0, %s50
      %s51 = sphi 0, %s48
      %s52 = sphi 0, %s51
      %s68 = sphi 0, %s52
      %s72 = sphi 0, %s72
      %s74 = sphi 0, %s72
      %s75 = sphi 0, %s74
      %s89 = sphi 0, %s75
      %s93 = sphi 0, %s93
      %s95 = sphi 0, %s93
      %s96 = sphi 0, %s95
      %s110 = sphi 0, %s96
      %s114 = sphi 0, %s114
      %s116 = sphi 0, %s114
      %s117 = sphi 0, %s116
      %s131 = sphi 0, %s117
      %s135 = sphi 0, %s135
      %s137 = sphi 0, %s135
      %s138 = sphi 0, %s137
      %s152 = sphi 0, %s138
      %s162 = sphi 0, %s164
      %s165 = sphi 0, %s162
      %s166 = sphi 0, %s165
      %s182 = sphi 0, %s166
    $region4: #{tpu_custom_call.1} parent=1 // loop_header_branch
      %25 = sbr.rel (%p23) target = $region8
    $region5: #{tpu_custom_call.1} parent=1 // loop_body
      %s27 = ssub.s32 %s22, 1
      %s28 = ssub.s32 %s22, 2
      %s35 = sadd.s32 1, %s30
      %p36 = scmp.ge.s32.totalorder %s35, 2
      %s37 = scalar_select %p36, 0, %s35
      %s38 = sadd.s32 1, %s29
      %s39 = scalar_select %p36, %s38, %s29
      %p40 = scmp.ge.s32.totalorder %s39, 2
      %s41 = scalar_select %p40, 0, %s39
      %s42 = smul.u32 %s29, 2
      %s43 = sadd.s32 %s42, %s30
      %s44 = smul.u32 %s41, 2
      %s45 = sadd.s32 %s44, %s37
      %s46 = ssub.s32 %s43, %s45
      %p47 = scmp.eq.s32.totalorder %s46, 0
      %s49 = sadd.s32 %s48, 1
      %s50 = scalar_select %p47, %s48, %s49
      %p53 = pneg %p47
      %p54 = scmp.eq.s32.totalorder %s22, 3
      %p55 = por %p53, %p54
      %p56 = scmp.ne.s32.totalorder %s48, %s51
      %p57 = scmp.eq.s32.totalorder %s22, 0
      %p58 = por %p56, %p57
      %p59 = scmp.ne.s32.totalorder %s48, %s51
      %p60 = scmp.eq.s32.totalorder %s27, 3
      %p61 = por %p59, %p60
      %p62 = scmp.ne.s32.totalorder %s51, %s52
      %p63 = scmp.eq.s32.totalorder %s27, 0
      %p64 = por %p62, %p63
      %p65 = scmp.ne.s32.totalorder %s51, %s52
      %p66 = scmp.eq.s32.totalorder %s28, 3
      %p67 = por %p65, %p66
      %p69 = scmp.ne.s32.totalorder %s52, %s68
      %p70 = scmp.eq.s32.totalorder %s28, 0
      %p71 = por %p69, %p70
      %s73 = sadd.s32 %s72, 1
      %p76 = scmp.eq.s32.totalorder %s22, 3
      %p77 = scmp.ne.s32.totalorder %s72, %s74
      %p78 = scmp.eq.s32.totalorder %s22, 0
      %p79 = por %p77, %p78
      %p80 = scmp.ne.s32.totalorder %s72, %s74
      %p81 = scmp.eq.s32.totalorder %s27, 3
      %p82 = por %p80, %p81
      %p83 = scmp.ne.s32.totalorder %s74, %s75
      %p84 = scmp.eq.s32.totalorder %s27, 0
      %p85 = por %p83, %p84
      %p86 = scmp.ne.s32.totalorder %s74, %s75
      %p87 = scmp.eq.s32.totalorder %s28, 3
      %p88 = por %p86, %p87
      %p90 = scmp.ne.s32.totalorder %s75, %s89
      %p91 = scmp.eq.s32.totalorder %s28, 0
      %p92 = por %p90, %p91
      %s94 = sadd.s32 %s93, 1
      %p97 = scmp.eq.s32.totalorder %s22, 3
      %p98 = scmp.ne.s32.totalorder %s93, %s95
      %p99 = scmp.eq.s32.totalorder %s22, 0
      %p100 = por %p98, %p99
      %p101 = scmp.ne.s32.totalorder %s93, %s95
      %p102 = scmp.eq.s32.totalorder %s27, 3
      %p103 = por %p101, %p102
      %p104 = scmp.ne.s32.totalorder %s95, %s96
      %p105 = scmp.eq.s32.totalorder %s27, 0
      %p106 = por %p104, %p105
      %p107 = scmp.ne.s32.totalorder %s95, %s96
      %p108 = scmp.eq.s32.totalorder %s28, 3
      %p109 = por %p107, %p108
      %p111 = scmp.ne.s32.totalorder %s96, %s110
      %p112 = scmp.eq.s32.totalorder %s28, 0
      %p113 = por %p111, %p112
      %s115 = sadd.s32 %s114, 1
      %p118 = scmp.eq.s32.totalorder %s22, 3
      %p119 = scmp.ne.s32.totalorder %s114, %s116
      %p120 = scmp.eq.s32.totalorder %s22, 0
      %p121 = por %p119, %p120
      %p122 = scmp.ne.s32.totalorder %s114, %s116
      %p123 = scmp.eq.s32.totalorder %s27, 3
      %p124 = por %p122, %p123
      %p125 = scmp.ne.s32.totalorder %s116, %s117
      %p126 = scmp.eq.s32.totalorder %s27, 0
      %p127 = por %p125, %p126
      %p128 = scmp.ne.s32.totalorder %s116, %s117
      %p129 = scmp.eq.s32.totalorder %s28, 3
      %p130 = por %p128, %p129
      %p132 = scmp.ne.s32.totalorder %s117, %s131
      %p133 = scmp.eq.s32.totalorder %s28, 0
      %p134 = por %p132, %p133
      %s136 = sadd.s32 %s135, 1
      %p139 = scmp.eq.s32.totalorder %s22, 3
      %p140 = scmp.ne.s32.totalorder %s135, %s137
      %p141 = scmp.eq.s32.totalorder %s22, 0
      %p142 = por %p140, %p141
      %p143 = scmp.ne.s32.totalorder %s135, %s137
      %p144 = scmp.eq.s32.totalorder %s27, 3
      %p145 = por %p143, %p144
      %p146 = scmp.ne.s32.totalorder %s137, %s138
      %p147 = scmp.eq.s32.totalorder %s27, 0
      %p148 = por %p146, %p147
      %p149 = scmp.ne.s32.totalorder %s137, %s138
      %p150 = scmp.eq.s32.totalorder %s28, 3
      %p151 = por %p149, %p150
      %p153 = scmp.ne.s32.totalorder %s138, %s152
      %p154 = scmp.eq.s32.totalorder %s28, 0
      %p155 = por %p153, %p154
      %s156 = smul.u32 %s29, 2
      %s157 = sadd.s32 %s156, %s30
      %s158 = smul.u32 %s41, 2
      %s159 = sadd.s32 %s158, %s37
      %s160 = ssub.s32 %s157, %s159
      %p161 = scmp.eq.s32.totalorder %s160, 0
      %s163 = sadd.s32 %s162, 1
      %s164 = scalar_select %p161, %s162, %s163
      %p167 = pneg %p161
      %p168 = scmp.eq.s32.totalorder %s22, 3
      %p169 = por %p167, %p168
      %p170 = scmp.ne.s32.totalorder %s162, %s165
      %p171 = scmp.eq.s32.totalorder %s22, 0
      %p172 = por %p170, %p171
      %p173 = scmp.ne.s32.totalorder %s162, %s165
      %p174 = scmp.eq.s32.totalorder %s27, 3
      %p175 = por %p173, %p174
      %p176 = scmp.ne.s32.totalorder %s165, %s166
      %p177 = scmp.eq.s32.totalorder %s27, 0
      %p178 = por %p176, %p177
      %p179 = scmp.ne.s32.totalorder %s165, %s166
      %p180 = scmp.eq.s32.totalorder %s28, 3
      %p181 = por %p179, %p180
      %p183 = scmp.ne.s32.totalorder %s166, %s182
      %p184 = scmp.eq.s32.totalorder %s28, 0
      %p185 = por %p183, %p184
      %p186 = scmp.le.s32.totalorder 1, %s22
      %p187 = scmp.lt.s32.totalorder %s22, 5
      %p188 = pnand %p186, %p187
      %p189 = pneg %p188
      // Predicated region
      $region9: #{tpu_custom_call.1} parent=5 // pred_check
        _
      $region10: #{tpu_custom_call.1} parent=5 // pred_check_branch
        %191 = sbr.rel (%p188) target = $region12
      $region11: #{tpu_custom_call.1} parent=5 // pred_region
        %s192 = ssub.s32 %s22, 1
        // Predicated region
        $region13: #{tpu_custom_call.1} parent=11 // pred_check
          %p193 = pneg %p85
        $region14: #{tpu_custom_call.1} parent=11 // pred_check_branch
          %195 = sbr.rel (%p193) target = $region16
        $region15: #{tpu_custom_call.1} parent=11 // pred_region
          _
        $region16: #{tpu_custom_call.1} parent=11 // pred_fallthru
          _
        // Predicated region
        $region17: #{tpu_custom_call.1} parent=11 // pred_check
          %p196 = pneg %p106
        $region18: #{tpu_custom_call.1} parent=11 // pred_check_branch
          %198 = sbr.rel (%p196) target = $region20
        $region19: #{tpu_custom_call.1} parent=11 // pred_region
          _
        $region20: #{tpu_custom_call.1} parent=11 // pred_fallthru
          _
        // Predicated region
        $region21: #{tpu_custom_call.1} parent=11 // pred_check
          %p199 = pneg %p127
        $region22: #{tpu_custom_call.1} parent=11 // pred_check_branch
          %201 = sbr.rel (%p199) target = $region24
        $region23: #{tpu_custom_call.1} parent=11 // pred_region
          _
        $region24: #{tpu_custom_call.1} parent=11 // pred_fallthru
          _
        // Predicated region
        $region25: #{tpu_custom_call.1} parent=11 // pred_check
          %p202 = pneg %p148
        $region26: #{tpu_custom_call.1} parent=11 // pred_check_branch
          %204 = sbr.rel (%p202) target = $region28
        $region27: #{tpu_custom_call.1} parent=11 // pred_region
          _
        $region28: #{tpu_custom_call.1} parent=11 // pred_fallthru
          _
      $region12: #{tpu_custom_call.1} parent=5 // pred_fallthru
        _
      %p205 = scmp.lt.s32.totalorder %s22, 4
      // Predicated region
      $region29: #{tpu_custom_call.1} parent=5 // pred_check
        %p206 = pneg %p205
      $region30: #{tpu_custom_call.1} parent=5 // pred_check_branch
        %208 = sbr.rel (%p206) target = $region32
      $region31: #{tpu_custom_call.1} parent=5 // pred_region
        // Predicated region
        $region33: #{tpu_custom_call.1} parent=31 // pred_check
          %p209 = pneg %p58
        $region34: #{tpu_custom_call.1} parent=31 // pred_check_branch
          %211 = sbr.rel (%p209) target = $region36
        $region35: #{tpu_custom_call.1} parent=31 // pred_region
          %s212 = smul.u32 %s29, 2
          %s213 = sadd.s32 %s212, %s30
          %s214 = smul.u32 4, %s213
          %p215 = scmp.lt.s32.totalorder %s214, 15
          %s216 = scalar_select %p215, %s214, 15
          %s217 = smul.addr %s216, 8
          %s218 = scalar_lea.vmem %s1, %s217
          %s219 = smul.u32 %s29, 2
          %s220 = sadd.s32 %s219, %s30
          %s221 = smul.u32 4, %s220
        $region36: #{tpu_custom_call.1} parent=31 // pred_fallthru
          _
      $region32: #{tpu_custom_call.1} parent=5 // pred_fallthru
        _
      %p222 = scmp.le.s32.totalorder 1, %s22
      %p223 = scmp.lt.s32.totalorder %s22, 5
      %p224 = pnand %p222, %p223
      %p225 = pneg %p224
      // Predicated region
      $region37: #{tpu_custom_call.1} parent=5 // pred_check
        _
      $region38: #{tpu_custom_call.1} parent=5 // pred_check_branch
        %227 = sbr.rel (%p224) target = $region40
      $region39: #{tpu_custom_call.1} parent=5 // pred_region
        %s228 = ssub.s32 %s22, 1
        %s229 = smul.u32 %s31, 2
        %s230 = sadd.s32 %s229, %s32
        %s231 = smul.u32 4, %s230
        %p232 = scmp.lt.s32.totalorder %s231, 15
        %s233 = scalar_select %p232, %s231, 15
        %s234 = smul.addr %s233, 8
        %s235 = scalar_lea.vmem %s1, %s234
        %p236 = pneg %p64
        %p237 = pneg %p61
        %p238 = pneg %p85
        %p239 = pneg %p82
        %p240 = pneg %p106
        %p241 = pneg %p103
        %p242 = pneg %p127
        %p243 = pneg %p124
        %p244 = pneg %p148
        %p245 = pneg %p145
        %p246 = pneg %p178
        %p247 = pneg %p175
        %s248 = sand.u32 %s165, 1
        %s249 = scalar_lea.sflag [#allocation7], %s248
        %s250 = sand.u32 %s165, 1
        %s251 = smul.addr %s250, 32
        %s252 = scalar_lea.vmem [#allocation6], %s251
        %s253 = smul.u32 %s31, 2
        %s254 = sadd.s32 %s253, %s32
        %s255 = smul.u32 4, %s254
        %p256 = scmp.lt.s32.totalorder %s255, 15
        %s257 = scalar_select %p256, %s255, 15
        %s258 = smul.addr %s257, 8
        %s259 = scalar_lea.vmem %s1, %s258
        %s260 = smul.u32 %s31, 2
        %s261 = sadd.s32 %s260, %s32
        %s262 = smul.u32 4, %s261
        %s263 = smul.u32 %s31, 2
        %s264 = sadd.s32 %s263, %s32
        %s265 = smul.u32 4, %s264
        %s266 = smul.u32 %s31, 2
        %s267 = sadd.s32 %s266, %s32
        %s268 = sand.u32 %s32, 1
        %p269 = scmp.eq.s32.totalorder %s32, 0
        // Predicated region
        $region41: #{tpu_custom_call.1} parent=39 // pred_check
          %p270 = pneg %p269
        $region42: #{tpu_custom_call.1} parent=39 // pred_check_branch
          %272 = sbr.rel (%p270) target = $region44
        $region43: #{tpu_custom_call.1} parent=39 // pred_region
          %s273 = smul.u32 %s267, 32
          %s274 = smul.u32 %s268, 32
          loop: start=0, step=1, limit=32
          $region45: #{tpu_custom_call.1} parent=43 // loop_pre_header
            _
          $region46: #{tpu_custom_call.1} parent=43 // loop_header
            %s276 = sphi 0, %s280
            %p277 = scmp.ge.s32.totalorder %s276, 32
          $region47: #{tpu_custom_call.1} parent=43 // loop_header_branch
            %279 = sbr.rel (%p277) target = $region51
          $region48: #{tpu_custom_call.1} parent=43 // loop_body
            %s281 = sadd.s32 %s273, %s276
            %s282 = sld [smem:[#allocation5 + %s281]]
            %s283 = sadd.s32 %s274, %s276
            %s284 = smul.addr %s282, 16
            %s285 = scalar_lea.hbm %s2, %s284
            %s286 = scalar_lea.vmem [#allocation2], %s283
            %s287 = scalar_lea.sflag [#allocation3], %s268
            // Predicated region
            $region52: #{tpu_custom_call.1} parent=48 // pred_check
              _
            $region53: #{tpu_custom_call.1} parent=48 // pred_check_branch
              %289 = sbr.rel target = $region55
            $region54: #{tpu_custom_call.1} parent=48 // pred_region
              %290 = sst [smem:[#allocation10]] [#allocation9]
              %291 = sst [smem:[#allocation11]] [#allocation8]
            $region55: #{tpu_custom_call.1} parent=48 // pred_fallthru
              _
            %293 = shalt.err (0)
            %s295 = sshll.u32 %s286, 4
            %s296 = int_to_ptr.vmem [resolvable:$true] %s295
            %298 = dma.hbm_to_vmem [thread:$0]  %s285, 16, %s296, %s287
          $region49: #{tpu_custom_call.1} parent=43 // loop_footer
            %s280 = sadd.s32 1, %s276
          $region50: #{tpu_custom_call.1} parent=43 // loop_footer_branch
            %275 = sbr.rel target = $region46
          $region51: #{tpu_custom_call.1} parent=43 // loop_exit
            _
        $region44: #{tpu_custom_call.1} parent=39 // pred_fallthru
          _
        %s299 = sadd.s32 %s32, 1
        %p300 = scmp.lt.s32.totalorder %s299, 2
        // Predicated region
        $region56: #{tpu_custom_call.1} parent=39 // pred_check
          %p301 = pneg %p300
        $region57: #{tpu_custom_call.1} parent=39 // pred_check_branch
          %303 = sbr.rel (%p301) target = $region59
        $region58: #{tpu_custom_call.1} parent=39 // pred_region
          %s304 = sadd.s32 %s267, 1
          %s305 = ssub.s32 1, %s268
          %s306 = smul.u32 %s304, 32
          %s307 = smul.u32 %s305, 32
          loop: start=0, step=1, limit=32
          $region60: #{tpu_custom_call.1} parent=58 // loop_pre_header
            _
          $region61: #{tpu_custom_call.1} parent=58 // loop_header
            %s309 = sphi 0, %s313
            %p310 = scmp.ge.s32.totalorder %s309, 32
          $region62: #{tpu_custom_call.1} parent=58 // loop_header_branch
            %312 = sbr.rel (%p310) target = $region66
          $region63: #{tpu_custom_call.1} parent=58 // loop_body
            %s314 = sadd.s32 %s306, %s309
            %s315 = sld [smem:[#allocation5 + %s314]]
            %s316 = sadd.s32 %s307, %s309
            %s317 = smul.addr %s315, 16
            %s318 = scalar_lea.hbm %s2, %s317
            %s319 = scalar_lea.vmem [#allocation2], %s316
            %s320 = scalar_lea.sflag [#allocation3], %s305
            // Predicated region
            $region67: #{tpu_custom_call.1} parent=63 // pred_check
              _
            $region68: #{tpu_custom_call.1} parent=63 // pred_check_branch
              %322 = sbr.rel target = $region70
            $region69: #{tpu_custom_call.1} parent=63 // pred_region
              %323 = sst [smem:[#allocation10]] [#allocation13]
              %324 = sst [smem:[#allocation11]] [#allocation12]
            $region70: #{tpu_custom_call.1} parent=63 // pred_fallthru
              _
            %326 = shalt.err (0)
            %s328 = sshll.u32 %s319, 4
            %s329 = int_to_ptr.vmem [resolvable:$true] %s328
            %331 = dma.hbm_to_vmem [thread:$0]  %s318, 16, %s329, %s320
          $region64: #{tpu_custom_call.1} parent=58 // loop_footer
            %s313 = sadd.s32 1, %s309
          $region65: #{tpu_custom_call.1} parent=58 // loop_footer_branch
            %308 = sbr.rel target = $region61
          $region66: #{tpu_custom_call.1} parent=58 // loop_exit
            _
        $region59: #{tpu_custom_call.1} parent=39 // pred_fallthru
          _
        %v332 = vld [vmem:[%s259] sm:$0xff]
        %v333 = vld [vmem:[%s259 + $0x8] sm:$0xff]
        %v334 = vld [vmem:[%s259 + $0x10] sm:$0xff]
        %v335 = vld [vmem:[%s259 + $0x18] sm:$0xff]
        %p336 = scmp.lt.s32.totalorder %s267, 0
        %s337 = ssub.s32 0, %s267
        %s338 = scalar_select %p336, %s337, %s267
        %s339 = sand.u32 %s338, 1
        %s340 = ssub.s32 0, %s339
        %s341 = scalar_select %p336, %s340, %s339
        %p342 = scmp.ne.s32.totalorder %s341, 0
        %p343 = scmp.lt.s32.totalorder %s341, 0
        %p344 = pnand %p343, %p342
        %p345 = pneg %p344
        %s346 = sadd.s32 %s341, 2
        %s347 = scalar_select %p345, %s346, %s341
        %s348 = smul.u32 %s347, 32
        %s349 = scalar_lea.vmem %s4, %s348
        %v350 = vld [vmem:[%s349] sm:$0xff]
        %v351 = vld [vmem:[%s349 + $0x8] sm:$0xff]
        %v352 = vld [vmem:[%s349 + $0x10] sm:$0xff]
        %v353 = vld [vmem:[%s349 + $0x18] sm:$0xff]
        %v354 = vld [vmem:[%s3] sm:$0x1]
        %vm355 = vcmp.eq.s32.totalorder %v332, 0
        %vm356 = vcmp.eq.s32.totalorder %v333, 0
        %vm357 = vcmp.eq.s32.totalorder %v334, 0
        %vm358 = vcmp.eq.s32.totalorder %v335, 0
        %v359 = vsel %vm355, 1, 0
        %v360 = vsel %vm356, 1, 0
        %v361 = vsel %vm357, 1, 0
        %v362 = vsel %vm358, 1, 0
        %363 = vset.pattern.permute.xlu0 0
        %364 = vperm.xlu0 %363, %v359
        %v365 = vpop.permute.xlu0 %364
        %366 = vset.pattern.permute.xlu0 0
        %367 = vperm.xlu0 %366, %v360
        %v368 = vpop.permute.xlu0 %367
        %369 = vset.pattern.permute.xlu0 0
        %370 = vperm.xlu0 %369, %v361
        %v371 = vpop.permute.xlu0 %370
        %372 = vset.pattern.permute.xlu0 0
        %373 = vperm.xlu0 %372, %v362
        %v374 = vpop.permute.xlu0 %373
        %vm375 = vcmp.eq.s32.totalorder %v365, 1
        %vm376 = vcmp.eq.s32.totalorder %v368, 1
        %vm377 = vcmp.eq.s32.totalorder %v371, 1
        %vm378 = vcmp.eq.s32.totalorder %v374, 1
        %v379 = vlaneseq
        %v380 = vshrl.u32 %v379, 7
        %v381 = vsub.s32 0, %v380
        %v382 = vrot.slane %v354, %v381
        %v383 = vsel %vm375, %v382, 0.0
        %v384 = vsel %vm376, %v382, 0.0
        %v385 = vsel %vm377, %v382, 0.0
        %v386 = vsel %vm378, %v382, 0.0
        %v387 = vadd.f32 %v350, %v383
        %v388 = vadd.f32 %v351, %v384
        %v389 = vadd.f32 %v352, %v385
        %v390 = vadd.f32 %v353, %v386
        %v391 = vld [vmem:[%s3 + $0x1] sm:$0x1]
        %vm392 = vcmp.eq.s32.totalorder %v332, 1
        %vm393 = vcmp.eq.s32.totalorder %v333, 1
        %vm394 = vcmp.eq.s32.totalorder %v334, 1
        %vm395 = vcmp.eq.s32.totalorder %v335, 1
        %v396 = vsel %vm392, 1, 0
        %v397 = vsel %vm393, 1, 0
        %v398 = vsel %vm394, 1, 0
        %v399 = vsel %vm395, 1, 0
        %400 = vset.pattern.permute.xlu0 0
        %401 = vperm.xlu0 %400, %v396
        %v402 = vpop.permute.xlu0 %401
        %403 = vset.pattern.permute.xlu0 0
        %404 = vperm.xlu0 %403, %v397
        %v405 = vpop.permute.xlu0 %404
        %406 = vset.pattern.permute.xlu0 0
        %407 = vperm.xlu0 %406, %v398
        %v408 = vpop.permute.xlu0 %407
        %409 = vset.pattern.permute.xlu0 0
        %410 = vperm.xlu0 %409, %v399
        %v411 = vpop.permute.xlu0 %410
        %vm412 = vcmp.eq.s32.totalorder %v402, 1
        %vm413 = vcmp.eq.s32.totalorder %v405, 1
        %vm414 = vcmp.eq.s32.totalorder %v408, 1
        %vm415 = vcmp.eq.s32.totalorder %v411, 1
        %v416 = vlaneseq
        %v417 = vshrl.u32 %v416, 7
        %v418 = vsub.s32 0, %v417
        %v419 = vrot.slane %v391, %v418
        %v420 = vsel %vm412, %v419, 0.0
        %v421 = vsel %vm413, %v419, 0.0
        %v422 = vsel %vm414, %v419, 0.0
        %v423 = vsel %vm415, %v419, 0.0
        %v424 = vadd.f32 %v387, %v420
        %v425 = vadd.f32 %v388, %v421
        %v426 = vadd.f32 %v389, %v422
        %v427 = vadd.f32 %v390, %v423
        %v428 = vld [vmem:[%s3 + $0x2] sm:$0x1]
        %vm429 = vcmp.eq.s32.totalorder %v332, 2
        %vm430 = vcmp.eq.s32.totalorder %v333, 2
        %vm431 = vcmp.eq.s32.totalorder %v334, 2
        %vm432 = vcmp.eq.s32.totalorder %v335, 2
        %v433 = vsel %vm429, 1, 0
        %v434 = vsel %vm430, 1, 0
        %v435 = vsel %vm431, 1, 0
        %v436 = vsel %vm432, 1, 0
        %437 = vset.pattern.permute.xlu0 0
        %438 = vperm.xlu0 %437, %v433
        %v439 = vpop.permute.xlu0 %438
        %440 = vset.pattern.permute.xlu0 0
        %441 = vperm.xlu0 %440, %v434
        %v442 = vpop.permute.xlu0 %441
        %443 = vset.pattern.permute.xlu0 0
        %444 = vperm.xlu0 %443, %v435
        %v445 = vpop.permute.xlu0 %444
        %446 = vset.pattern.permute.xlu0 0
        %447 = vperm.xlu0 %446, %v436
        %v448 = vpop.permute.xlu0 %447
        %vm449 = vcmp.eq.s32.totalorder %v439, 1
        %vm450 = vcmp.eq.s32.totalorder %v442, 1
        %vm451 = vcmp.eq.s32.totalorder %v445, 1
        %vm452 = vcmp.eq.s32.totalorder %v448, 1
        %v453 = vlaneseq
        %v454 = vshrl.u32 %v453, 7
        %v455 = vsub.s32 0, %v454
        %v456 = vrot.slane %v428, %v455
        %v457 = vsel %vm449, %v456, 0.0
        %v458 = vsel %vm450, %v456, 0.0
        %v459 = vsel %vm451, %v456, 0.0
        %v460 = vsel %vm452, %v456, 0.0
        %v461 = vadd.f32 %v424, %v457
        %v462 = vadd.f32 %v425, %v458
        %v463 = vadd.f32 %v426, %v459
        %v464 = vadd.f32 %v427, %v460
        %v465 = vld [vmem:[%s3 + $0x3] sm:$0x1]
        %vm466 = vcmp.eq.s32.totalorder %v332, 3
        %vm467 = vcmp.eq.s32.totalorder %v333, 3
        %vm468 = vcmp.eq.s32.totalorder %v334, 3
        %vm469 = vcmp.eq.s32.totalorder %v335, 3
        %v470 = vsel %vm466, 1, 0
        %v471 = vsel %vm467, 1, 0
        %v472 = vsel %vm468, 1, 0
        %v473 = vsel %vm469, 1, 0
        %474 = vset.pattern.permute.xlu0 0
        %475 = vperm.xlu0 %474, %v470
        %v476 = vpop.permute.xlu0 %475
        %477 = vset.pattern.permute.xlu0 0
        %478 = vperm.xlu0 %477, %v471
        %v479 = vpop.permute.xlu0 %478
        %480 = vset.pattern.permute.xlu0 0
        %481 = vperm.xlu0 %480, %v472
        %v482 = vpop.permute.xlu0 %481
        %483 = vset.pattern.permute.xlu0 0
        %484 = vperm.xlu0 %483, %v473
        %v485 = vpop.permute.xlu0 %484
        %vm486 = vcmp.eq.s32.totalorder %v476, 1
        %vm487 = vcmp.eq.s32.totalorder %v479, 1
        %vm488 = vcmp.eq.s32.totalorder %v482, 1
        %vm489 = vcmp.eq.s32.totalorder %v485, 1
        %v490 = vlaneseq
        %v491 = vshrl.u32 %v490, 7
        %v492 = vsub.s32 0, %v491
        %v493 = vrot.slane %v465, %v492
        %v494 = vsel %vm486, %v493, 0.0
        %v495 = vsel %vm487, %v493, 0.0
        %v496 = vsel %vm488, %v493, 0.0
        %v497 = vsel %vm489, %v493, 0.0
        %v498 = vadd.f32 %v461, %v494
        %v499 = vadd.f32 %v462, %v495
        %v500 = vadd.f32 %v463, %v496
        %v501 = vadd.f32 %v464, %v497
        %s502 = smul.u32 %s268, 32
        %s503 = scalar_lea.vmem [#allocation2], %s502
        %s504 = scalar_lea.sflag [#allocation3], %s268
        %s505 = smul.u32 32, 1
        %s506 = sshll.u32 %s505, 4
        %507 = dma.done %s504, %s506
        %v508 = vld [vmem:[%s503] sm:$0xff]
        %v509 = vld [vmem:[%s503 + $0x8] sm:$0xff]
        %v510 = vld [vmem:[%s503 + $0x10] sm:$0xff]
        %v511 = vld [vmem:[%s503 + $0x18] sm:$0xff]
        %v512 = vadd.f32 %v508, %v498
        %v513 = vadd.f32 %v509, %v499
        %v514 = vadd.f32 %v510, %v500
        %v515 = vadd.f32 %v511, %v501
        %516 = vadd.xlane.f32.xlu0 %v512
        %v517 = vpop.xlane.xlu0 %516
        %518 = vadd.xlane.f32.xlu0 %v513
        %v519 = vpop.xlane.xlu0 %518
        %520 = vadd.xlane.f32.xlu0 %v514
        %v521 = vpop.xlane.xlu0 %520
        %522 = vadd.xlane.f32.xlu0 %v515
        %v523 = vpop.xlane.xlu0 %522
        %v524 = vmul.f32 %v517, 0.0078125
        %v525 = vmul.f32 %v519, 0.0078125
        %v526 = vmul.f32 %v521, 0.0078125
        %v527 = vmul.f32 %v523, 0.0078125
        %v528 = vmul.f32 %v512, %v512
        %v529 = vmul.f32 %v513, %v513
        %v530 = vmul.f32 %v514, %v514
        %v531 = vmul.f32 %v515, %v515
        %532 = vadd.xlane.f32.xlu0 %v528
        %v533 = vpop.xlane.xlu0 %532
        %534 = vadd.xlane.f32.xlu0 %v529
        %v535 = vpop.xlane.xlu0 %534
        %536 = vadd.xlane.f32.xlu0 %v530
        %v537 = vpop.xlane.xlu0 %536
        %538 = vadd.xlane.f32.xlu0 %v531
        %v539 = vpop.xlane.xlu0 %538
        %v540 = vmul.f32 %v533, 0.0078125
        %v541 = vmul.f32 %v535, 0.0078125
        %v542 = vmul.f32 %v537, 0.0078125
        %v543 = vmul.f32 %v539, 0.0078125
        %v544 = vmul.f32 %v524, %v524
        %v545 = vmul.f32 %v525, %v525
        %v546 = vmul.f32 %v526, %v526
        %v547 = vmul.f32 %v527, %v527
        %v548 = vsub.f32 %v540, %v544
        %v549 = vsub.f32 %v541, %v545
        %v550 = vsub.f32 %v542, %v546
        %v551 = vsub.f32 %v543, %v547
        %v552 = vsub.f32 %v512, %v524
        %v553 = vsub.f32 %v513, %v525
        %v554 = vsub.f32 %v514, %v526
        %v555 = vsub.f32 %v515, %v527
        %v556 = vadd.f32 %v548, 1e-05
        %v557 = vadd.f32 %v549, 1e-05
        %v558 = vadd.f32 %v550, 1e-05
        %v559 = vadd.f32 %v551, 1e-05
        %v560 = vrsqrt.pop %v556
        %v561 = vrsqrt.pop %v557
        %v562 = vrsqrt.pop %v558
        %v563 = vrsqrt.pop %v559
        %v564 = vmul.f32 %v552, %v560
        %v565 = vmul.f32 %v553, %v561
        %v566 = vmul.f32 %v554, %v562
        %v567 = vmul.f32 %v555, %v563
        %v568 = vld [vmem:[%s5] sm:$0x1]
        %v570 = vlaneseq
        %v571 = vshrl.u32 %v570, 7
        %v572 = vsub.s32 0, %v571
        %v573 = vrot.slane %v568, %v572
        %v575 = vmul.f32 %v564, %v573
        %v576 = vmul.f32 %v565, %v573
        %v577 = vmul.f32 %v566, %v573
        %v578 = vmul.f32 %v567, %v573
        %v579 = vld [vmem:[%s6] sm:$0x1]
        %v581 = vlaneseq
        %v582 = vshrl.u32 %v581, 7
        %v583 = vsub.s32 0, %v582
        %v584 = vrot.slane %v579, %v583
        %v586 = vadd.f32 %v575, %v584
        %v587 = vadd.f32 %v576, %v584
        %v588 = vadd.f32 %v577, %v584
        %v589 = vadd.f32 %v578, %v584
        %590 = vst [vmem:[%s252] sm:$0xff] %v586
        %591 = vst [vmem:[%s252 + $0x8] sm:$0xff] %v587
        %592 = vst [vmem:[%s252 + $0x10] sm:$0xff] %v588
        %593 = vst [vmem:[%s252 + $0x18] sm:$0xff] %v589
        %s594 = sand.u32 %s165, 1
        %s595 = scalar_lea.sflag [#allocation7], %s594
        %s596 = sand.u32 %s165, 1
        %s597 = smul.addr %s596, 32
        %s598 = scalar_lea.vmem [#allocation6], %s597
        // Predicated region
        $region71: #{tpu_custom_call.1} parent=39 // pred_check
          %p599 = pneg %p175
        $region72: #{tpu_custom_call.1} parent=39 // pred_check_branch
          %601 = sbr.rel (%p599) target = $region74
        $region73: #{tpu_custom_call.1} parent=39 // pred_region
          %s602 = smul.u32 %s31, 2
          %s603 = sadd.s32 %s602, %s32
          %s604 = smul.u32 4, %s603
          %s606 = ssub.s32 512, 512
          %607 = vsyncadd %s595, %s606
          %s608 = smul.addr %s604, 128
          %s609 = scalar_lea.hbm %s7, %s608
          %s610 = sshll.u32 %s598, 4
          %s611 = int_to_ptr.vmem [resolvable:$true] %s610
          %616 = dma.vmem_to_hbm [thread:$0]  %s611, 512, %s609, %s595, 128, 128, 8
        $region74: #{tpu_custom_call.1} parent=39 // pred_fallthru
          _
      $region40: #{tpu_custom_call.1} parent=5 // pred_fallthru
        _
      %p617 = scmp.le.s32.totalorder 2, %s22
      // Predicated region
      $region75: #{tpu_custom_call.1} parent=5 // pred_check
        %p618 = pneg %p617
      $region76: #{tpu_custom_call.1} parent=5 // pred_check_branch
        %620 = sbr.rel (%p618) target = $region78
      $region77: #{tpu_custom_call.1} parent=5 // pred_region
        %s621 = ssub.s32 %s22, 2
        // Predicated region
        $region79: #{tpu_custom_call.1} parent=77 // pred_check
          %p622 = pneg %p181
        $region80: #{tpu_custom_call.1} parent=77 // pred_check_branch
          %624 = sbr.rel (%p622) target = $region82
        $region81: #{tpu_custom_call.1} parent=77 // pred_region
          %s625 = sand.u32 %s166, 1
          %s626 = scalar_lea.sflag [#allocation7], %s625
          %s627 = sand.u32 %s166, 1
          %s628 = smul.addr %s627, 32
          %s629 = scalar_lea.vmem [#allocation6], %s628
          %630 = dma.done %s626, 512
        $region82: #{tpu_custom_call.1} parent=77 // pred_fallthru
          _
      $region78: #{tpu_custom_call.1} parent=5 // pred_fallthru
        _
    $region6: #{tpu_custom_call.1} parent=1 // loop_footer
      %s26 = sadd.s32 1, %s22
    $region7: #{tpu_custom_call.1} parent=1 // loop_footer_branch
      %21 = sbr.rel target = $region3
    $region8: #{tpu_custom_call.1} parent=1 // loop_exit
      _
    %631 = vsyncpa [#allocation7], 1
    %s632 = scalar_lea.sflag [#allocation7], 1
    %633 = vsyncpa %s632, 1
  %634 = vsyncmov [#allocation3]
  %s635 = vpop.sfrf %634
  %p636 = scmp.eq.s32.totalorder %s635, 0
  %p637 = pneg %p636
  %639 = shalt.err (%p637)
  %s640 = scalar_lea.sflag [#allocation3], 1
  %641 = vsyncmov %s640
  %s642 = vpop.sfrf %641
  %p643 = scmp.eq.s32.totalorder %s642, 0
  %p644 = pneg %p643
  %646 = shalt.err (%p644)

</llo_original>
